<compile_context>
chip_gen: v7x
topology: tpu7x:2x2x1
jax: 0.10.0
libtpu: 0.0.40
codegen_flags: <defaults>
</compile_context>

<pallas_src>
import math

import jax
import jax.numpy as jnp
from jax.experimental import pallas as pl
from jax.experimental.pallas import tpu as pltpu


_TARGET_BLOCK_BYTES = 4 * 1024 * 1024   # ~4 MiB per buffer (~86% HBM roofline, few steps)
_VMEM_LIMIT_BYTES = 48 * 1024 * 1024    # explicit: v5e's default scoped VMEM is only 16 MiB


def _supports_bf16_vector():
    """True on chips with bf16 VALU/EUP (v6e, v7x); False on v5e and older."""
    try:
        kind = jax.devices()[0].device_kind.lower()
    except Exception:
        return False
    return not any(tag in kind for tag in ("v2", "v3", "v4", "v5"))


def _make_gelu_kernel(compute_dtype):
    def kernel(x_ref, o_ref):
        x = x_ref[...].astype(compute_dtype)
        # 0.5 * x * (1 + tanh(sqrt(2/pi) * (x + 0.044715 * x^3)))
        c = jnp.asarray(0.7978845608028654, compute_dtype)   # sqrt(2/pi)
        k = jnp.asarray(0.044715, compute_dtype)
        half = jnp.asarray(0.5, compute_dtype)
        one = jnp.asarray(1.0, compute_dtype)
        inner = c * (x + k * (x * x * x))
        y = half * x * (one + jnp.tanh(inner))
        o_ref[...] = y.astype(o_ref.dtype)
    return kernel


def _gelu_2d(x2d, compute_dtype):
    """Tiled elementwise GELU over a (rows, width) slab; width % 128 == 0 (or rows small)."""
    rows, width = x2d.shape
    itemsize = jnp.dtype(x2d.dtype).itemsize
    sub = max(8, 32 // itemsize)  # sublane quantum: 8 (f32), 16 (bf16), 32 (i8)

    if rows <= sub:
        br = rows  # single full-rows block (block dim == full array dim is legal)
    else:
        # byte-budgeted row block; ragged tail block is masked by Pallas (no padding)
        target_rows = max(sub, _TARGET_BLOCK_BYTES // (width * itemsize))
        br = max(sub, (min(target_rows, rows) // sub) * sub)
        # keep >= 2 grid steps so the parallel axis can shard across v7x's 2 TCs
        if pl.cdiv(rows, br) < 2:
            br = max(sub, ((pl.cdiv(rows, 2) + sub - 1) // sub) * sub)
        # prefer an EVEN number of grid steps so work balances across the 2 TCs
        if pl.cdiv(rows, br) > 1 and pl.cdiv(rows, br) % 2 == 1:
            nb = br
            while nb > sub and pl.cdiv(rows, nb) % 2 == 1:
                nb -= sub
            if pl.cdiv(rows, nb) % 2 == 0:
                br = nb

    n = rows * width
    cost = pl.CostEstimate(
        flops=8 * n,
        transcendentals=n,
        bytes_accessed=2 * n * itemsize,
    )

    # TODO(synk): if a measured sweep shows exposed DMA at step boundaries, add
    # pipeline_mode=pl.Buffered(3) on the BlockSpecs (keep only if it wins).
    return pl.pallas_call(
        _make_gelu_kernel(compute_dtype),
        out_shape=jax.ShapeDtypeStruct((rows, width), x2d.dtype),
        grid_spec=pltpu.PrefetchScalarGridSpec(
            num_scalar_prefetch=0,
            grid=(pl.cdiv(rows, br),),
            in_specs=[pl.BlockSpec((br, width), lambda i: (i, 0))],
            out_specs=pl.BlockSpec((br, width), lambda i: (i, 0)),
        ),
        compiler_params=pltpu.CompilerParams(
            dimension_semantics=("parallel",),
            vmem_limit_bytes=_VMEM_LIMIT_BYTES,
        ),
        cost_estimate=cost,
    )(x2d)


def _gelu_whole(x2d, compute_dtype):
    """Single-block call (block == full array dims). Used only for tiny tails /
    tiny inputs, so lane-sparse stores here are irrelevant."""
    return pl.pallas_call(
        _make_gelu_kernel(compute_dtype),
        out_shape=jax.ShapeDtypeStruct(x2d.shape, x2d.dtype),
        compiler_params=pltpu.CompilerParams(vmem_limit_bytes=_VMEM_LIMIT_BYTES),
    )(x2d)


def gelu_pallas(x):
    orig_shape = x.shape
    n = math.prod(orig_shape) if orig_shape else 1
    if n == 0:
        return x

    # dtype-aware compute path: bf16 math on v6e/v7x keeps the kernel HBM-bound;
    # f32 math elsewhere (v5e has no bf16 VALU/EUP) and for f32 inputs.
    if x.dtype == jnp.bfloat16 and _supports_bf16_vector():
        compute_dtype = jnp.bfloat16
    else:
        compute_dtype = jnp.float32

    x_flat = x.reshape(-1)

    if n % 128 == 0:
        width = next(w for w in (1024, 512, 256, 128) if n % w == 0)
        out = _gelu_2d(x_flat.reshape(n // width, width), compute_dtype)
        return out.reshape(orig_shape)

    # Fallback for n % 128 != 0: lane-dense main slab + tiny whole-block tail.
    n_main = (n // 128) * 128
    if n_main == 0:
        out = _gelu_whole(x_flat.reshape(1, n), compute_dtype)
        return out.reshape(orig_shape)
    width = next(w for w in (1024, 512, 256, 128) if n_main % w == 0)
    main = _gelu_2d(x_flat[:n_main].reshape(n_main // width, width), compute_dtype)
    tail = _gelu_whole(x_flat[n_main:].reshape(1, n - n_main), compute_dtype)
    # TODO(synk): the slice/concat here costs one extra copy of the main slab in
    # the rare n % 128 != 0 case; the real fix is fusing GELU into the producing
    # matmul's epilogue at the call site.
    out = jnp.concatenate([main.reshape(-1), tail.reshape(-1)])
    return out.reshape(orig_shape)


def gelu_ref(x):
    xf = x.astype(jnp.float32)
    return (0.5 * xf * (1.0 + jnp.tanh(jnp.sqrt(2.0 / jnp.pi)
            * (xf + 0.044715 * xf ** 3)))).astype(x.dtype)


if __name__ == "__main__":
    key = jax.random.PRNGKey(0)
    # small shape consistent with GPT usage: (batch=2, seq=8, hidden=32)
    x = jax.random.normal(key, (2, 8, 32), dtype=jnp.float32)

    y = gelu_pallas(x)
    jax.block_until_ready(y)

    y_ref = gelu_ref(x)
    assert y.shape == x.shape and y.dtype == x.dtype
    assert jnp.allclose(y, y_ref, atol=1e-5, rtol=1e-5)
    print("KERNEL_OK")
</pallas_src>

<mosaic_0001>
module attributes {stable_mosaic.version = 11 : i64} {
  func.func @kernel(%arg0: i32, %arg1: memref<1x512xf32, #tpu.memory_space<vmem>>, %arg2: memref<1x512xf32, #tpu.memory_space<vmem>>) attributes {dimension_semantics = [#tpu.dimension_semantics<parallel>], iteration_bounds = array<i64: 1>, scalar_prefetch = 0 : i64, scratch_operands = 0 : i64, tpu.core_type = #tpu.core_type<tc>, window_params = [{transform_indices = @transform_0, window_bounds = array<i64: 1, 512>}, {transform_indices = @transform_1, window_bounds = array<i64: 1, 512>}]} {
    %c0 = arith.constant 0 : index
    %c0_0 = arith.constant 0 : index
    %0 = vector.load %arg1[%c0, %c0_0] : memref<1x512xf32, #tpu.memory_space<vmem>>, vector<1x512xf32>
    %1 = arith.mulf %0, %0 : vector<1x512xf32>
    %2 = arith.mulf %1, %0 : vector<1x512xf32>
    %cst = arith.constant 4.471500e-02 : f32
    %3 = vector.broadcast %cst : f32 to vector<1x512xf32>
    %4 = arith.mulf %3, %2 : vector<1x512xf32>
    %5 = arith.addf %0, %4 : vector<1x512xf32>
    %cst_1 = arith.constant 0.797884583 : f32
    %6 = vector.broadcast %cst_1 : f32 to vector<1x512xf32>
    %7 = arith.mulf %6, %5 : vector<1x512xf32>
    %cst_2 = arith.constant 5.000000e-01 : f32
    %8 = vector.broadcast %cst_2 : f32 to vector<1x512xf32>
    %9 = arith.mulf %8, %0 : vector<1x512xf32>
    %10 = math.tanh %7 : vector<1x512xf32>
    %cst_3 = arith.constant 1.000000e+00 : f32
    %11 = vector.broadcast %cst_3 : f32 to vector<1x512xf32>
    %12 = arith.addf %11, %10 : vector<1x512xf32>
    %13 = arith.mulf %9, %12 : vector<1x512xf32>
    %c0_4 = arith.constant 0 : index
    %c0_5 = arith.constant 0 : index
    %14 = vector.load %arg2[%c0_4, %c0_5] : memref<1x512xf32, #tpu.memory_space<vmem>>, vector<1x512xf32>
    tpu.vector_store %arg2[%c0_4, %c0_5], %13 {strides = array<i32>} : memref<1x512xf32, #tpu.memory_space<vmem>>, vector<1x512xf32>,
    return
  }
  func.func @transform_0(%arg0: i32) -> (i32, i32) {
    %c0_i32 = arith.constant 0 : i32
    %c0_i32_0 = arith.constant 0 : i32
    return %arg0, %c0_i32 : i32, i32
  }
  func.func @transform_1(%arg0: i32) -> (i32, i32) {
    %c0_i32 = arith.constant 0 : i32
    %c0_i32_0 = arith.constant 0 : i32
    return %arg0, %c0_i32 : i32, i32
  }
}

</mosaic_0001>

<llo_original>
// kernel: tpu_custom_call.1
$region0: #{tpu_custom_call.1}
  #allocation0 [shape = 'u32[]', space=smem, size = 0x4, offset = 0x4, fixed_abs, tag = 'smem constant byte address 0x4 - core index']
  #allocation1 [shape = 'u32[144,128]{1,0:T(1,128)}', space=vmem, size = 0x12000, scoped, tag = 'internal scratch']
  %s0 = inlined_call_operand.hbm [shape: f32[1,512], index: 0, kind: input, shape index: {}]
  %s1 = inlined_call_operand.hbm [shape: f32[1,512], index: 1, kind: output, shape index: {}]
  %s2 = sld [smem:[#allocation0]]
  $region18: #{tpu_custom_call.1} parent=0
    _
  %s4 = ssub.s32 1, %s2
  %s5 = scalar_select 0, %s4, %s2
  $region1: #{tpu_custom_call.1} parent=0
    #allocation2 [shape = 'u8[2048]{0}', space=vmem, size = 0x800, scoped, tag = 'input window, operand 0, single buffered']
    #allocation3 [shape = 's32[1]{0}', space=sflag, size = 0x4, scoped, tag = 'scoped memory for tpu_custom_call.1']
    #allocation4 [shape = 's32[1]{0}', space=sflag, size = 0x4, scoped, tag = 'scoped memory for tpu_custom_call.1']
    #allocation5 [shape = 'u8[2048]{0}', space=vmem, size = 0x800, scoped, tag = 'output window, operand 0, single buffered']
    %6 = vsyncpa [#allocation3], 0
    %7 = vsyncpa [#allocation4], 0
    // Predicated region
    $region2: #{tpu_custom_call.1} parent=1 // pred_check
      _
    $region3: #{tpu_custom_call.1} parent=1 // pred_check_branch
      %9 = sbr.rel (0) target = $region5
    $region4: #{tpu_custom_call.1} parent=1 // pred_region
      %s11 = ssub.s32 64, 64
      %12 = vsyncadd [#allocation3], %s11
      %s14 = sshll.u32 [#allocation2], 4
      %s15 = int_to_ptr.vmem [resolvable:$true] %s14
      %17 = dma.hbm_to_vmem [thread:$0]  %s0, 64, %s15, [#allocation3]
    $region5: #{tpu_custom_call.1} parent=1 // pred_fallthru
      _
    // Predicated region
    $region6: #{tpu_custom_call.1} parent=1 // pred_check
      _
    $region7: #{tpu_custom_call.1} parent=1 // pred_check_branch
      %19 = sbr.rel (0) target = $region9
    $region8: #{tpu_custom_call.1} parent=1 // pred_region
      %20 = dma.done [#allocation3], 64
    $region9: #{tpu_custom_call.1} parent=1 // pred_fallthru
      _
    %v21 = vld [vmem:[#allocation2] sm:$0xf]
    %v22 = vmul.f32 %v21, %v21
    %v23 = vmul.f32 %v22, %v21
    %v24 = vmul.f32 %v23, 0.044715
    %v25 = vadd.f32 %v21, %v24
    %v26 = vmul.f32 %v25, 0.7978846
    %v27 = vmul.f32 %v21, 0.5
    %v28 = vtanh.pop %v26
    %v29 = vadd.f32 %v28, 1.0
    %v30 = vmul.f32 %v27, %v29
    %v31 = vlaneseq
    %vm32 = vcmp.ge.s32.totalorder %v31, 0
    %vm33 = vcmp.lt.s32.totalorder %v31, 512
    %vm34 = vmand %vm32, %vm33
    %35 = vst.msk [vmem:[#allocation5] sm:$0xf] %vm34, %v30
    // Predicated region
    $region10: #{tpu_custom_call.1} parent=1 // pred_check
      _
    $region11: #{tpu_custom_call.1} parent=1 // pred_check_branch
      %37 = sbr.rel (0) target = $region13
    $region12: #{tpu_custom_call.1} parent=1 // pred_region
      %s39 = ssub.s32 64, 64
      %40 = vsyncadd [#allocation4], %s39
      %s42 = sshll.u32 [#allocation5], 4
      %s43 = int_to_ptr.vmem [resolvable:$true] %s42
      %45 = dma.vmem_to_hbm [thread:$0]  %s43, 64, %s1, [#allocation4]
    $region13: #{tpu_custom_call.1} parent=1 // pred_fallthru
      _
    // Predicated region
    $region14: #{tpu_custom_call.1} parent=1 // pred_check
      _
    $region15: #{tpu_custom_call.1} parent=1 // pred_check_branch
      %47 = sbr.rel (0) target = $region17
    $region16: #{tpu_custom_call.1} parent=1 // pred_region
      %48 = dma.done [#allocation4], 64
    $region17: #{tpu_custom_call.1} parent=1 // pred_fallthru
      _
    %49 = vsyncpa [#allocation3], 1
    %50 = vsyncpa [#allocation4], 1

</llo_original>
